<compile_context>
chip_gen: v5e
topology: v5e:2x2
jax: 0.10.0
libtpu: 0.0.40
codegen_flags: <defaults>
</compile_context>

<pallas_src>
import functools

import jax
import jax.numpy as jnp
from jax.experimental import pallas as pl
from jax.experimental.pallas import tpu as pltpu


# ---------------------------------------------------------------------------
# Small planning helpers (pure Python ints)
# ---------------------------------------------------------------------------
def _cdiv(a, b):
    return -(-a // b)


def _round_up(x, m):
    return _cdiv(x, m) * m


def _sublane(dtype):
    # rows-per-sublane-tile by element size: f32 -> 8, bf16 -> 16, int8/fp8 -> 32
    return {4: 8, 2: 16, 1: 32}.get(jnp.dtype(dtype).itemsize, 8)


# ---------------------------------------------------------------------------
# Fused kernel: both loss terms per grid step.
# ---------------------------------------------------------------------------
def _semi_loss_kernel(lx_ref, tx_ref, lu_ref, tu_ref,
                      ce_out_ref, sq_out_ref, acc_ce, acc_sq,
                      *, bx, bu, n_inner):
    p = pl.program_id(0)          # TensorCore-parallel batch split (v7x)
    i = pl.program_id(1)          # sequential batch-tile axis
    t = p * n_inner + i           # global batch-tile index

    @pl.when(i == 0)
    def _():
        acc_ce[...] = jnp.zeros_like(acc_ce)
        acc_sq[...] = jnp.zeros_like(acc_sq)

    # ---- labeled stream: sum_c( log_softmax(logits_x) * targets_x ) -------
    lx = lx_ref[...].astype(jnp.float32)             # [tbx, Cx]
    tx = tx_ref[...].astype(jnp.float32)
    mx = jnp.max(lx, axis=1, keepdims=True)
    sh = lx - mx
    lse = jnp.log(jnp.sum(jnp.exp(sh), axis=1, keepdims=True))
    # sum_c(log_softmax * t) == sum_c(shifted * t) - lse * sum_c(t)
    ce_row = (jnp.sum(sh * tx, axis=1, keepdims=True)
              - lse * jnp.sum(tx, axis=1, keepdims=True))        # [tbx, 1]
    tbx = lx.shape[0]
    # Mask padded / overhang rows AFTER the row-reduce (cheap (tbx,1) select).
    rowx = t * tbx + jax.lax.broadcasted_iota(jnp.int32, (tbx, 1), 0)
    ce_row = jnp.where(rowx < bx, ce_row, 0.0)
    acc_ce[...] += jnp.sum(ce_row, keepdims=True)

    # ---- unlabeled stream: sum_c( (softmax(logits_u) - targets_u)^2 ) -----
    lu = lu_ref[...].astype(jnp.float32)             # [tbu, Cu]
    tu = tu_ref[...].astype(jnp.float32)
    mu = jnp.max(lu, axis=1, keepdims=True)
    eu = jnp.exp(lu - mu)
    # approx=True would add ~1e-3 rel error; kept exact for 1e-5 tolerance.
    probs = eu * pl.reciprocal(jnp.sum(eu, axis=1, keepdims=True), approx=False)
    d = probs - tu
    sq_row = jnp.sum(d * d, axis=1, keepdims=True)   # [tbu, 1]
    tbu = lu.shape[0]
    rowu = t * tbu + jax.lax.broadcasted_iota(jnp.int32, (tbu, 1), 0)
    sq_row = jnp.where(rowu < bu, sq_row, 0.0)
    acc_sq[...] += jnp.sum(sq_row, keepdims=True)

    # Flush the per-core partials once, as a lane-dense unmasked (8,128) store.
    @pl.when(i == n_inner - 1)
    def _():
        ce_out_ref[0] = jnp.broadcast_to(acc_ce[...], (8, 128))
        sq_out_ref[0] = jnp.broadcast_to(acc_sq[...], (8, 128))


# ---------------------------------------------------------------------------
# Tile planning: size batch tiles by VMEM bytes (double-buffered, lane-padded)
# ---------------------------------------------------------------------------
def _plan(logits_x, targets_x, logits_u, targets_u, block_budget_bytes):
    bx, cx = logits_x.shape
    bu, cu = logits_u.shape
    isz = lambda a: jnp.dtype(a.dtype).itemsize
    # VMEM bytes per row of ONE pipeline buffer (lane dim pads to 128).
    rbx = _round_up(cx, 128) * (isz(logits_x) + isz(targets_x))
    rbu = _round_up(cu, 128) * (isz(logits_u) + isz(targets_u))
    sub_x = max(_sublane(logits_x.dtype), _sublane(targets_x.dtype))
    sub_u = max(_sublane(logits_u.dtype), _sublane(targets_u.dtype))
    # Number of batch tiles so that 2 pipeline buffers of all 4 blocks fit.
    n_tiles = max(1, _cdiv(2 * (bx * rbx + bu * rbu), block_budget_bytes))
    tb_x = _round_up(_cdiv(bx, n_tiles), sub_x)
    tb_u = _round_up(_cdiv(bu, n_tiles), sub_u)
    nx_tiles = _cdiv(bx, tb_x)
    nu_tiles = _cdiv(bu, tb_u)
    n_tiles = max(nx_tiles, nu_tiles)
    return tb_x, tb_u, nx_tiles, nu_tiles, n_tiles


def semi_loss(logits_x, targets_x, logits_u, targets_u,
              *, block_budget_bytes=24 * 1024 * 1024):
    """Returns (Lx, Lu) as float32 scalars.  Inputs may be f32 or bf16
    (bf16 halves HBM traffic; accumulation is always f32)."""
    bx, cx = logits_x.shape
    bu, cu = logits_u.shape
    tb_x, tb_u, nx_tiles, nu_tiles, n_tiles = _plan(
        logits_x, targets_x, logits_u, targets_u, block_budget_bytes)

    # Second TensorCore (v7x) only helps when there is more than one tile.
    npar = 2 if n_tiles >= 2 else 1
    n_inner = _cdiv(n_tiles, npar)

    # Clamp each stream's tile index to its last valid tile; overhang tiles
    # are fully row-masked inside the kernel (and the repeated fetch is a
    # no-op because the block index does not change).
    def x_map(p, i):
        return (jnp.minimum(p * n_inner + i, nx_tiles - 1), 0)

    def u_map(p, i):
        return (jnp.minimum(p * n_inner + i, nu_tiles - 1), 0)

    def o_map(p, i):
        return (p, 0, 0)

    isz = lambda a: jnp.dtype(a.dtype).itemsize
    cost = pl.CostEstimate(
        flops=8 * (bx * cx + bu * cu),
        transcendentals=bx * cx + bu * cu + bx + bu,
        bytes_accessed=(logits_x.size * isz(logits_x)
                        + targets_x.size * isz(targets_x)
                        + logits_u.size * isz(logits_u)
                        + targets_u.size * isz(targets_u)
                        + 2 * npar * 8 * 128 * 4),
    )

    out_ce, out_sq = pl.pallas_call(
        functools.partial(_semi_loss_kernel, bx=bx, bu=bu, n_inner=n_inner),
        out_shape=(jax.ShapeDtypeStruct((npar, 8, 128), jnp.float32),
                   jax.ShapeDtypeStruct((npar, 8, 128), jnp.float32)),
        grid_spec=pltpu.PrefetchScalarGridSpec(
            num_scalar_prefetch=0,
            grid=(npar, n_inner),
            in_specs=[
                pl.BlockSpec((tb_x, cx), x_map),
                pl.BlockSpec((tb_x, cx), x_map),
                pl.BlockSpec((tb_u, cu), u_map),
                pl.BlockSpec((tb_u, cu), u_map),
            ],
            out_specs=[
                pl.BlockSpec((1, 8, 128), o_map),
                pl.BlockSpec((1, 8, 128), o_map),
            ],
            scratch_shapes=[pltpu.VMEM((1, 1), jnp.float32),
                            pltpu.VMEM((1, 1), jnp.float32)],
        ),
        compiler_params=pltpu.CompilerParams(
            dimension_semantics=("parallel", "arbitrary"),
            vmem_limit_bytes=32 * 1024 * 1024),
        cost_estimate=cost,
    )(logits_x, targets_x, logits_u, targets_u)

    ce_sum = jnp.sum(out_ce[:, 0, 0])      # sum the (up to 2) per-core partials
    sq_sum = jnp.sum(out_sq[:, 0, 0])
    Lx = -(ce_sum / jnp.float32(bx))
    Lu = sq_sum / jnp.float32(bu * cu)
    return Lx, Lu


# ---------------------------------------------------------------------------
# Pure-JAX reference
# ---------------------------------------------------------------------------
def _semi_loss_ref(logits_x, targets_x, logits_u, targets_u):
    log_probs = jax.nn.log_softmax(logits_x.astype(jnp.float32), axis=1)
    Lx = -jnp.mean(jnp.sum(log_probs * targets_x.astype(jnp.float32), axis=1))
    probs_u = jax.nn.softmax(logits_u.astype(jnp.float32), axis=1)
    Lu = jnp.mean((probs_u - targets_u.astype(jnp.float32)) ** 2)
    return Lx, Lu


if __name__ == "__main__":
    key = jax.random.PRNGKey(0)
    k1, k2, k3, k4 = jax.random.split(key, 4)

    # MixMatch-style shapes: labeled batch 8, unlabeled batch 16, 32 classes.
    Bx, Bu, C = 8, 16, 32
    logits_x = jax.random.normal(k1, (Bx, C), dtype=jnp.float32)
    targets_x = jax.nn.softmax(jax.random.normal(k2, (Bx, C), dtype=jnp.float32), axis=1)
    logits_u = jax.random.normal(k3, (Bu, C), dtype=jnp.float32)
    targets_u = jax.nn.softmax(2.0 * jax.random.normal(k4, (Bu, C), dtype=jnp.float32), axis=1)

    Lx, Lu = semi_loss(logits_x, targets_x, logits_u, targets_u)
    jax.block_until_ready((Lx, Lu))
    Lx_ref, Lu_ref = _semi_loss_ref(logits_x, targets_x, logits_u, targets_u)
    assert jnp.allclose(Lx, Lx_ref, rtol=1e-5, atol=1e-5), (Lx, Lx_ref)
    assert jnp.allclose(Lu, Lu_ref, rtol=1e-5, atol=1e-5), (Lu, Lu_ref)

    # Larger batches, default (byte-sized) tiles -> single fused step.
    kb = jax.random.split(jax.random.PRNGKey(1), 4)
    Bx2, Bu2 = 1040, 2096
    lx2 = jax.random.normal(kb[0], (Bx2, C), dtype=jnp.float32)
    tx2 = jax.nn.softmax(jax.random.normal(kb[1], (Bx2, C), dtype=jnp.float32), axis=1)
    lu2 = jax.random.normal(kb[2], (Bu2, C), dtype=jnp.float32)
    tu2 = jax.nn.softmax(jax.random.normal(kb[3], (Bu2, C), dtype=jnp.float32), axis=1)
    Lx2, Lu2 = semi_loss(lx2, tx2, lu2, tu2)
    jax.block_until_ready((Lx2, Lu2))
    Lx2_ref, Lu2_ref = _semi_loss_ref(lx2, tx2, lu2, tu2)
    assert jnp.allclose(Lx2, Lx2_ref, rtol=1e-4, atol=1e-5), (Lx2, Lx2_ref)
    assert jnp.allclose(Lu2, Lu2_ref, rtol=1e-4, atol=1e-5), (Lu2, Lu2_ref)

    # Non-sublane-aligned, uneven batches with a tiny VMEM budget: exercises
    # the multi-tile grid, the 2-wide parallel axis, the clamped index maps,
    # the partial-last-tile masking and the resident accumulators.
    kc = jax.random.split(jax.random.PRNGKey(2), 4)
    Bx3, Bu3 = 1037, 2093
    lx3 = jax.random.normal(kc[0], (Bx3, C), dtype=jnp.float32)
    tx3 = jax.nn.softmax(jax.random.normal(kc[1], (Bx3, C), dtype=jnp.float32), axis=1)
    lu3 = jax.random.normal(kc[2], (Bu3, C), dtype=jnp.float32)
    tu3 = jax.nn.softmax(jax.random.normal(kc[3], (Bu3, C), dtype=jnp.float32), axis=1)
    Lx3, Lu3 = semi_loss(lx3, tx3, lu3, tu3, block_budget_bytes=256 * 1024)
    jax.block_until_ready((Lx3, Lu3))
    Lx3_ref, Lu3_ref = _semi_loss_ref(lx3, tx3, lu3, tu3)
    assert jnp.allclose(Lx3, Lx3_ref, rtol=1e-4, atol=1e-5), (Lx3, Lx3_ref)
    assert jnp.allclose(Lu3, Lu3_ref, rtol=1e-4, atol=1e-5), (Lu3, Lu3_ref)

    print("KERNEL_OK")
</pallas_src>

<mosaic_0001>
module attributes {stable_mosaic.version = 11 : i64} {
  func.func @_semi_loss_kernel(%arg0: i32, %arg1: i32, %arg2: memref<8x32xf32, #tpu.memory_space<vmem>>, %arg3: memref<8x32xf32, #tpu.memory_space<vmem>>, %arg4: memref<16x32xf32, #tpu.memory_space<vmem>>, %arg5: memref<16x32xf32, #tpu.memory_space<vmem>>, %arg6: memref<1x8x128xf32, #tpu.memory_space<vmem>>, %arg7: memref<1x8x128xf32, #tpu.memory_space<vmem>>, %arg8: memref<1x1xf32, #tpu.memory_space<vmem>>, %arg9: memref<1x1xf32, #tpu.memory_space<vmem>>) attributes {dimension_semantics = [#tpu.dimension_semantics<parallel>, #tpu.dimension_semantics<arbitrary>], iteration_bounds = array<i64: 1, 1>, scalar_prefetch = 0 : i64, scratch_operands = 2 : i64, tpu.core_type = #tpu.core_type<tc>, window_params = [{transform_indices = @transform_0, window_bounds = array<i64: 8, 32>}, {transform_indices = @transform_1, window_bounds = array<i64: 8, 32>}, {transform_indices = @transform_2, window_bounds = array<i64: 16, 32>}, {transform_indices = @transform_3, window_bounds = array<i64: 16, 32>}, {transform_indices = @transform_4, window_bounds = array<i64: 1, 8, 128>}, {transform_indices = @transform_5, window_bounds = array<i64: 1, 8, 128>}]} {
    %c1_i32 = arith.constant 1 : i32
    %0 = arith.muli %arg0, %c1_i32 : i32
    %1 = arith.addi %0, %arg1 : i32
    %c0_i32 = arith.constant 0 : i32
    %2 = arith.cmpi eq, %arg1, %c0_i32 : i32
    %3 = arith.extui %2 : i1 to i32
    %c0_i32_0 = arith.constant 0 : i32
    %4 = arith.cmpi ne, %3, %c0_i32_0 : i32
    scf.if %4 {
      %cst_30 = arith.constant 0.000000e+00 : f32
      %73 = vector.broadcast %cst_30 : f32 to vector<1x1xf32>
      %c0_31 = arith.constant 0 : index
      %c0_32 = arith.constant 0 : index
      %74 = vector.load %arg8[%c0_31, %c0_32] : memref<1x1xf32, #tpu.memory_space<vmem>>, vector<1x1xf32>
      tpu.vector_store %arg8[%c0_31, %c0_32], %73 {strides = array<i32>} : memref<1x1xf32, #tpu.memory_space<vmem>>, vector<1x1xf32>,
      %cst_33 = arith.constant 0.000000e+00 : f32
      %75 = vector.broadcast %cst_33 : f32 to vector<1x1xf32>
      %c0_34 = arith.constant 0 : index
      %c0_35 = arith.constant 0 : index
      %76 = vector.load %arg9[%c0_34, %c0_35] : memref<1x1xf32, #tpu.memory_space<vmem>>, vector<1x1xf32>
      tpu.vector_store %arg9[%c0_34, %c0_35], %75 {strides = array<i32>} : memref<1x1xf32, #tpu.memory_space<vmem>>, vector<1x1xf32>,
    } else {
    }
    %c0 = arith.constant 0 : index
    %c0_1 = arith.constant 0 : index
    %5 = vector.load %arg2[%c0, %c0_1] : memref<8x32xf32, #tpu.memory_space<vmem>>, vector<8x32xf32>
    %c0_2 = arith.constant 0 : index
    %c0_3 = arith.constant 0 : index
    %6 = vector.load %arg3[%c0_2, %c0_3] : memref<8x32xf32, #tpu.memory_space<vmem>>, vector<8x32xf32>
    %cst = arith.constant dense<0xFF800000> : vector<8xf32>
    %7 = vector.multi_reduction <maximumf>, %5, %cst [1] : vector<8x32xf32> to vector<8xf32>
    %8 = vector.shape_cast %7 : vector<8xf32> to vector<8x1xf32>
    %9 = vector.broadcast %8 : vector<8x1xf32> to vector<8x32xf32>
    %10 = arith.subf %5, %9 : vector<8x32xf32>
    %11 = math.exp %10 : vector<8x32xf32>
    %cst_4 = arith.constant dense<0.000000e+00> : vector<8xf32>
    %12 = vector.multi_reduction <add>, %11, %cst_4 [1] : vector<8x32xf32> to vector<8xf32>
    %13 = vector.shape_cast %12 : vector<8xf32> to vector<8x1xf32>
    %14 = math.log %13 : vector<8x1xf32>
    %15 = arith.mulf %10, %6 : vector<8x32xf32>
    %cst_5 = arith.constant dense<0.000000e+00> : vector<8xf32>
    %16 = vector.multi_reduction <add>, %15, %cst_5 [1] : vector<8x32xf32> to vector<8xf32>
    %17 = vector.shape_cast %16 : vector<8xf32> to vector<8x1xf32>
    %cst_6 = arith.constant dense<0.000000e+00> : vector<8xf32>
    %18 = vector.multi_reduction <add>, %6, %cst_6 [1] : vector<8x32xf32> to vector<8xf32>
    %19 = vector.shape_cast %18 : vector<8xf32> to vector<8x1xf32>
    %20 = arith.mulf %14, %19 : vector<8x1xf32>
    %21 = arith.subf %17, %20 : vector<8x1xf32>
    %c8_i32 = arith.constant 8 : i32
    %22 = arith.muli %1, %c8_i32 : i32
    %23 = tpu.iota {dimensions = array<i32: 0>} : vector<8x1xi32>
    %24 = vector.broadcast %22 : i32 to vector<8x1xi32>
    %25 = arith.addi %24, %23 : vector<8x1xi32>
    %c8_i32_7 = arith.constant 8 : i32
    %26 = vector.broadcast %c8_i32_7 : i32 to vector<8x1xi32>
    %27 = arith.cmpi slt, %25, %26 : vector<8x1xi32>
    %cst_8 = arith.constant 0.000000e+00 : f32
    %28 = vector.broadcast %cst_8 : f32 to vector<8x1xf32>
    %29 = arith.select %27, %21, %28 : vector<8x1xi1>, vector<8x1xf32>
    %c0_9 = arith.constant 0 : index
    %c0_10 = arith.constant 0 : index
    %30 = vector.load %arg8[%c0_9, %c0_10] : memref<1x1xf32, #tpu.memory_space<vmem>>, vector<1x1xf32>
    %31 = vector.shape_cast %29 : vector<8x1xf32> to vector<1x8x1xf32>
    %cst_11 = arith.constant dense<0.000000e+00> : vector<1xf32>
    %32 = vector.multi_reduction <add>, %31, %cst_11 [1, 2] : vector<1x8x1xf32> to vector<1xf32>
    %33 = vector.shape_cast %32 : vector<1xf32> to vector<1x1x1xf32>
    %34 = vector.extract %33[0, 0, 0] : f32 from vector<1x1x1xf32>
    %35 = vector.broadcast %34 : f32 to vector<1x1xf32>
    %36 = arith.addf %30, %35 : vector<1x1xf32>
    %c0_12 = arith.constant 0 : index
    %c0_13 = arith.constant 0 : index
    %37 = vector.load %arg8[%c0_12, %c0_13] : memref<1x1xf32, #tpu.memory_space<vmem>>, vector<1x1xf32>
    tpu.vector_store %arg8[%c0_12, %c0_13], %36 {strides = array<i32>} : memref<1x1xf32, #tpu.memory_space<vmem>>, vector<1x1xf32>,
    %c0_14 = arith.constant 0 : index
    %c0_15 = arith.constant 0 : index
    %38 = vector.load %arg4[%c0_14, %c0_15] : memref<16x32xf32, #tpu.memory_space<vmem>>, vector<16x32xf32>
    %c0_16 = arith.constant 0 : index
    %c0_17 = arith.constant 0 : index
    %39 = vector.load %arg5[%c0_16, %c0_17] : memref<16x32xf32, #tpu.memory_space<vmem>>, vector<16x32xf32>
    %cst_18 = arith.constant dense<0xFF800000> : vector<16xf32>
    %40 = vector.multi_reduction <maximumf>, %38, %cst_18 [1] : vector<16x32xf32> to vector<16xf32>
    %41 = vector.shape_cast %40 : vector<16xf32> to vector<16x1xf32>
    %42 = vector.broadcast %41 : vector<16x1xf32> to vector<16x32xf32>
    %43 = arith.subf %38, %42 : vector<16x32xf32>
    %44 = math.exp %43 : vector<16x32xf32>
    %cst_19 = arith.constant dense<0.000000e+00> : vector<16xf32>
    %45 = vector.multi_reduction <add>, %44, %cst_19 [1] : vector<16x32xf32> to vector<16xf32>
    %46 = vector.shape_cast %45 : vector<16xf32> to vector<16x1xf32>
    %47 = tpu.reciprocal %46 : vector<16x1xf32> -> vector<16x1xf32>
    %48 = vector.broadcast %47 : vector<16x1xf32> to vector<16x32xf32>
    %49 = arith.mulf %44, %48 : vector<16x32xf32>
    %50 = arith.subf %49, %39 : vector<16x32xf32>
    %51 = arith.mulf %50, %50 : vector<16x32xf32>
    %cst_20 = arith.constant dense<0.000000e+00> : vector<16xf32>
    %52 = vector.multi_reduction <add>, %51, %cst_20 [1] : vector<16x32xf32> to vector<16xf32>
    %53 = vector.shape_cast %52 : vector<16xf32> to vector<16x1xf32>
    %c16_i32 = arith.constant 16 : i32
    %54 = arith.muli %1, %c16_i32 : i32
    %55 = tpu.iota {dimensions = array<i32: 0>} : vector<16x1xi32>
    %56 = vector.broadcast %54 : i32 to vector<16x1xi32>
    %57 = arith.addi %56, %55 : vector<16x1xi32>
    %c16_i32_21 = arith.constant 16 : i32
    %58 = vector.broadcast %c16_i32_21 : i32 to vector<16x1xi32>
    %59 = arith.cmpi slt, %57, %58 : vector<16x1xi32>
    %cst_22 = arith.constant 0.000000e+00 : f32
    %60 = vector.broadcast %cst_22 : f32 to vector<16x1xf32>
    %61 = arith.select %59, %53, %60 : vector<16x1xi1>, vector<16x1xf32>
    %c0_23 = arith.constant 0 : index
    %c0_24 = arith.constant 0 : index
    %62 = vector.load %arg9[%c0_23, %c0_24] : memref<1x1xf32, #tpu.memory_space<vmem>>, vector<1x1xf32>
    %63 = vector.shape_cast %61 : vector<16x1xf32> to vector<1x16x1xf32>
    %cst_25 = arith.constant dense<0.000000e+00> : vector<1xf32>
    %64 = vector.multi_reduction <add>, %63, %cst_25 [1, 2] : vector<1x16x1xf32> to vector<1xf32>
    %65 = vector.shape_cast %64 : vector<1xf32> to vector<1x1x1xf32>
    %66 = vector.extract %65[0, 0, 0] : f32 from vector<1x1x1xf32>
    %67 = vector.broadcast %66 : f32 to vector<1x1xf32>
    %68 = arith.addf %62, %67 : vector<1x1xf32>
    %c0_26 = arith.constant 0 : index
    %c0_27 = arith.constant 0 : index
    %69 = vector.load %arg9[%c0_26, %c0_27] : memref<1x1xf32, #tpu.memory_space<vmem>>, vector<1x1xf32>
    tpu.vector_store %arg9[%c0_26, %c0_27], %68 {strides = array<i32>} : memref<1x1xf32, #tpu.memory_space<vmem>>, vector<1x1xf32>,
    %c0_i32_28 = arith.constant 0 : i32
    %70 = arith.cmpi eq, %arg1, %c0_i32_28 : i32
    %71 = arith.extui %70 : i1 to i32
    %c0_i32_29 = arith.constant 0 : i32
    %72 = arith.cmpi ne, %71, %c0_i32_29 : i32
    scf.if %72 {
      %c0_30 = arith.constant 0 : index
      %c0_31 = arith.constant 0 : index
      %73 = vector.load %arg8[%c0_30, %c0_31] : memref<1x1xf32, #tpu.memory_space<vmem>>, vector<1x1xf32>
      %74 = vector.shape_cast %73 : vector<1x1xf32> to vector<1x1xf32>
      %75 = vector.broadcast %74 : vector<1x1xf32> to vector<8x128xf32>
      %c0_32 = arith.constant 0 : index
      %c0_33 = arith.constant 0 : index
      %c0_34 = arith.constant 0 : index
      %76 = vector.load %arg6[%c0_32, %c0_33, %c0_34] : memref<1x8x128xf32, #tpu.memory_space<vmem>>, vector<1x8x128xf32>
      %77 = vector.shape_cast %76 : vector<1x8x128xf32> to vector<8x128xf32>
      %78 = vector.shape_cast %75 : vector<8x128xf32> to vector<1x8x128xf32>
      tpu.vector_store %arg6[%c0_32, %c0_33, %c0_34], %78 {strides = array<i32>} : memref<1x8x128xf32, #tpu.memory_space<vmem>>, vector<1x8x128xf32>,
      %c0_35 = arith.constant 0 : index
      %c0_36 = arith.constant 0 : index
      %79 = vector.load %arg9[%c0_35, %c0_36] : memref<1x1xf32, #tpu.memory_space<vmem>>, vector<1x1xf32>
      %80 = vector.shape_cast %79 : vector<1x1xf32> to vector<1x1xf32>
      %81 = vector.broadcast %80 : vector<1x1xf32> to vector<8x128xf32>
      %c0_37 = arith.constant 0 : index
      %c0_38 = arith.constant 0 : index
      %c0_39 = arith.constant 0 : index
      %82 = vector.load %arg7[%c0_37, %c0_38, %c0_39] : memref<1x8x128xf32, #tpu.memory_space<vmem>>, vector<1x8x128xf32>
      %83 = vector.shape_cast %82 : vector<1x8x128xf32> to vector<8x128xf32>
      %84 = vector.shape_cast %81 : vector<8x128xf32> to vector<1x8x128xf32>
      tpu.vector_store %arg7[%c0_37, %c0_38, %c0_39], %84 {strides = array<i32>} : memref<1x8x128xf32, #tpu.memory_space<vmem>>, vector<1x8x128xf32>,
    } else {
    }
    return
  }
  func.func @transform_0(%arg0: i32, %arg1: i32) -> (i32, i32) {
    %c1_i32 = arith.constant 1 : i32
    %0 = arith.muli %arg0, %c1_i32 : i32
    %1 = arith.addi %0, %arg1 : i32
    %c0_i32 = arith.constant 0 : i32
    %2 = arith.minsi %1, %c0_i32 : i32
    %c0_i32_0 = arith.constant 0 : i32
    %c0_i32_1 = arith.constant 0 : i32
    return %2, %c0_i32_0 : i32, i32
  }
  func.func @transform_1(%arg0: i32, %arg1: i32) -> (i32, i32) {
    %c1_i32 = arith.constant 1 : i32
    %0 = arith.muli %arg0, %c1_i32 : i32
    %1 = arith.addi %0, %arg1 : i32
    %c0_i32 = arith.constant 0 : i32
    %2 = arith.minsi %1, %c0_i32 : i32
    %c0_i32_0 = arith.constant 0 : i32
    %c0_i32_1 = arith.constant 0 : i32
    return %2, %c0_i32_0 : i32, i32
  }
  func.func @transform_2(%arg0: i32, %arg1: i32) -> (i32, i32) {
    %c1_i32 = arith.constant 1 : i32
    %0 = arith.muli %arg0, %c1_i32 : i32
    %1 = arith.addi %0, %arg1 : i32
    %c0_i32 = arith.constant 0 : i32
    %2 = arith.minsi %1, %c0_i32 : i32
    %c0_i32_0 = arith.constant 0 : i32
    %c0_i32_1 = arith.constant 0 : i32
    return %2, %c0_i32_0 : i32, i32
  }
  func.func @transform_3(%arg0: i32, %arg1: i32) -> (i32, i32) {
    %c1_i32 = arith.constant 1 : i32
    %0 = arith.muli %arg0, %c1_i32 : i32
    %1 = arith.addi %0, %arg1 : i32
    %c0_i32 = arith.constant 0 : i32
    %2 = arith.minsi %1, %c0_i32 : i32
    %c0_i32_0 = arith.constant 0 : i32
    %c0_i32_1 = arith.constant 0 : i32
    return %2, %c0_i32_0 : i32, i32
  }
  func.func @transform_4(%arg0: i32, %arg1: i32) -> (i32, i32, i32) {
    %c0_i32 = arith.constant 0 : i32
    %c0_i32_0 = arith.constant 0 : i32
    %c0_i32_1 = arith.constant 0 : i32
    return %arg0, %c0_i32, %c0_i32_0 : i32, i32, i32
  }
  func.func @transform_5(%arg0: i32, %arg1: i32) -> (i32, i32, i32) {
    %c0_i32 = arith.constant 0 : i32
    %c0_i32_0 = arith.constant 0 : i32
    %c0_i32_1 = arith.constant 0 : i32
    return %arg0, %c0_i32, %c0_i32_0 : i32, i32, i32
  }
}

</mosaic_0001>

<llo_original>
// kernel: tpu_custom_call.1
$region0: #{tpu_custom_call.1}
  #allocation0 [shape = 'u32[]', space=smem, size = 0x4, offset = 0x4, fixed_abs, tag = 'smem constant byte address 0x4 - core index']
  #allocation1 [shape = 'u32[72,128]{1,0:T(1,128)}', space=vmem, size = 0x9000, scoped, tag = 'internal scratch']
  #allocation2 [shape = 'f32[1,1]{1,0:T(1,128)}', space=vmem, size = 0x200, scoped, tag = 'scratch operand']
  #allocation3 [shape = 'f32[1,1]{1,0:T(1,128)}', space=vmem, size = 0x200, scoped, tag = 'scratch operand']
  %s0 = inlined_call_operand.hbm [shape: f32[8,32], index: 0, kind: input, shape index: {}]
  %s1 = inlined_call_operand.hbm [shape: f32[8,32], index: 1, kind: input, shape index: {}]
  %s2 = inlined_call_operand.hbm [shape: f32[16,32], index: 2, kind: input, shape index: {}]
  %s3 = inlined_call_operand.hbm [shape: f32[16,32], index: 3, kind: input, shape index: {}]
  %s4 = inlined_call_operand.hbm [shape: f32[1,8,128], index: 4, kind: output, shape index: {0}]
  %s5 = inlined_call_operand.hbm [shape: f32[1,8,128], index: 5, kind: output, shape index: {1}]
  %6 = xla_tuple %s4, %s5
  %s7 = sld [smem:[#allocation0]]
  $region58: #{tpu_custom_call.1} parent=0
    _
  %s9 = ssub.s32 1, %s7
  %s10 = scalar_select 0, %s9, %s7
  $region1: #{tpu_custom_call.1} parent=0
    #allocation4 [shape = 'u8[4096]{0}', space=vmem, size = 0x1000, scoped, tag = 'input window, operand 0, single buffered']
    #allocation5 [shape = 's32[1]{0}', space=sflag, size = 0x4, scoped, tag = 'scoped memory for tpu_custom_call.1']
    #allocation6 [shape = 's32[1]{0}', space=sflag, size = 0x4, scoped, tag = 'scoped memory for tpu_custom_call.1']
    #allocation7 [shape = 'u8[4096]{0}', space=vmem, size = 0x1000, scoped, tag = 'input window, operand 1, single buffered']
    #allocation8 [shape = 's32[1]{0}', space=sflag, size = 0x4, scoped, tag = 'scoped memory for tpu_custom_call.1']
    #allocation9 [shape = 'u8[8192]{0}', space=vmem, size = 0x2000, scoped, tag = 'input window, operand 2, single buffered']
    #allocation10 [shape = 'u8[8192]{0}', space=vmem, size = 0x2000, scoped, tag = 'input window, operand 3, single buffered']
    #allocation11 [shape = 's32[1]{0}', space=sflag, size = 0x4, scoped, tag = 'scoped memory for tpu_custom_call.1']
    #allocation12 [shape = 'u8[4096]{0}', space=vmem, size = 0x1000, scoped, tag = 'output window, operand 0, single buffered']
    #allocation13 [shape = 'u8[4096]{0}', space=vmem, size = 0x1000, scoped, tag = 'output window, operand 1, single buffered']
    #allocation14 [shape = 's32[1]{0}', space=sflag, size = 0x4, scoped, tag = 'scoped memory for tpu_custom_call.1']
    %11 = vsyncpa [#allocation5], 0
    %12 = vsyncpa [#allocation8], 0
    %13 = vsyncpa [#allocation11], 0
    %14 = vsyncpa [#allocation6], 0
    %15 = vsyncpa [#allocation14], 0
    // Predicated region
    $region2: #{tpu_custom_call.1} parent=1 // pred_check
      _
    $region3: #{tpu_custom_call.1} parent=1 // pred_check_branch
      %17 = sbr.rel (0) target = $region5
    $region4: #{tpu_custom_call.1} parent=1 // pred_region
      %s18 = sadd.s32 0, 0
      %p19 = scmp.lt.s32.totalorder %s18, 0
      %s20 = scalar_select %p19, %s18, 0
      %22 = vsyncadd [#allocation5], 0
      %s23 = smul.addr %s20, 8
      %s24 = scalar_lea.hbm %s0, %s23
      %s26 = sshll.u32 %s24, 4
      %s27 = int_to_ptr.hbm [resolvable:$true] %s26
      %s28 = sshll.u32 [#allocation4], 4
      %s29 = int_to_ptr.vmem [resolvable:$true] %s28
      %31 = dma.hbm_to_vmem [thread:$0]  %s27, 128, %s29, [#allocation5]
    $region5: #{tpu_custom_call.1} parent=1 // pred_fallthru
      _
    // Predicated region
    $region6: #{tpu_custom_call.1} parent=1 // pred_check
      _
    $region7: #{tpu_custom_call.1} parent=1 // pred_check_branch
      %33 = sbr.rel (0) target = $region9
    $region8: #{tpu_custom_call.1} parent=1 // pred_region
      %s34 = sadd.s32 0, 0
      %p35 = scmp.lt.s32.totalorder %s34, 0
      %s36 = scalar_select %p35, %s34, 0
      %38 = vsyncadd [#allocation8], 0
      %s39 = smul.addr %s36, 8
      %s40 = scalar_lea.hbm %s1, %s39
      %s42 = sshll.u32 %s40, 4
      %s43 = int_to_ptr.hbm [resolvable:$true] %s42
      %s44 = sshll.u32 [#allocation7], 4
      %s45 = int_to_ptr.vmem [resolvable:$true] %s44
      %47 = dma.hbm_to_vmem [thread:$0]  %s43, 128, %s45, [#allocation8]
    $region9: #{tpu_custom_call.1} parent=1 // pred_fallthru
      _
    // Predicated region
    $region10: #{tpu_custom_call.1} parent=1 // pred_check
      _
    $region11: #{tpu_custom_call.1} parent=1 // pred_check_branch
      %49 = sbr.rel (0) target = $region13
    $region12: #{tpu_custom_call.1} parent=1 // pred_region
      %s50 = sadd.s32 0, 0
      %p51 = scmp.lt.s32.totalorder %s50, 0
      %s52 = scalar_select %p51, %s50, 0
      %s53 = smul.u32 2, %s52
      %55 = vsyncadd [#allocation8], 0
      %s56 = smul.addr %s53, 8
      %s57 = scalar_lea.hbm %s2, %s56
      %s58 = sshll.u32 %s57, 4
      %s59 = int_to_ptr.hbm [resolvable:$true] %s58
      %s60 = sshll.u32 [#allocation9], 4
      %s61 = int_to_ptr.vmem [resolvable:$true] %s60
      %66 = dma.hbm_to_vmem [thread:$0]  %s59, 256, %s61, [#allocation8], 128, 128, 8
    $region13: #{tpu_custom_call.1} parent=1 // pred_fallthru
      _
    // Predicated region
    $region14: #{tpu_custom_call.1} parent=1 // pred_check
      _
    $region15: #{tpu_custom_call.1} parent=1 // pred_check_branch
      %68 = sbr.rel (0) target = $region17
    $region16: #{tpu_custom_call.1} parent=1 // pred_region
      %s69 = sadd.s32 0, 0
      %p70 = scmp.lt.s32.totalorder %s69, 0
      %s71 = scalar_select %p70, %s69, 0
      %s72 = smul.u32 2, %s71
      %74 = vsyncadd [#allocation11], 0
      %s75 = smul.addr %s72, 8
      %s76 = scalar_lea.hbm %s3, %s75
      %s77 = sshll.u32 %s76, 4
      %s78 = int_to_ptr.hbm [resolvable:$true] %s77
      %s79 = sshll.u32 [#allocation10], 4
      %s80 = int_to_ptr.vmem [resolvable:$true] %s79
      %85 = dma.hbm_to_vmem [thread:$0]  %s78, 256, %s80, [#allocation11], 128, 128, 8
    $region17: #{tpu_custom_call.1} parent=1 // pred_fallthru
      _
    // Predicated region
    $region18: #{tpu_custom_call.1} parent=1 // pred_check
      _
    $region19: #{tpu_custom_call.1} parent=1 // pred_check_branch
      %87 = sbr.rel (0) target = $region21
    $region20: #{tpu_custom_call.1} parent=1 // pred_region
      %89 = dma.done [#allocation5], 128
    $region21: #{tpu_custom_call.1} parent=1 // pred_fallthru
      _
    // Predicated region
    $region22: #{tpu_custom_call.1} parent=1 // pred_check
      _
    $region23: #{tpu_custom_call.1} parent=1 // pred_check_branch
      %91 = sbr.rel (0) target = $region25
    $region24: #{tpu_custom_call.1} parent=1 // pred_region
      %93 = dma.done [#allocation8], 128
    $region25: #{tpu_custom_call.1} parent=1 // pred_fallthru
      _
    // Predicated region
    $region26: #{tpu_custom_call.1} parent=1 // pred_check
      _
    $region27: #{tpu_custom_call.1} parent=1 // pred_check_branch
      %95 = sbr.rel (0) target = $region29
    $region28: #{tpu_custom_call.1} parent=1 // pred_region
      %97 = dma.done [#allocation8], 256
    $region29: #{tpu_custom_call.1} parent=1 // pred_fallthru
      _
    // Predicated region
    $region30: #{tpu_custom_call.1} parent=1 // pred_check
      _
    $region31: #{tpu_custom_call.1} parent=1 // pred_check_branch
      %99 = sbr.rel (0) target = $region33
    $region32: #{tpu_custom_call.1} parent=1 // pred_region
      %101 = dma.done [#allocation11], 256
    $region33: #{tpu_custom_call.1} parent=1 // pred_fallthru
      _
    %s102 = sadd.s32 0, 0
    %p103 = scmp.lt.s32.totalorder %s102, 0
    %s104 = scalar_select %p103, %s102, 0
    %s105 = sadd.s32 0, 0
    %p106 = scmp.lt.s32.totalorder %s105, 0
    %s107 = scalar_select %p106, %s105, 0
    %s108 = sadd.s32 0, 0
    %p109 = scmp.lt.s32.totalorder %s108, 0
    %s110 = scalar_select %p109, %s108, 0
    %s111 = smul.u32 2, %s110
    %s112 = sadd.s32 0, 0
    %p113 = scmp.lt.s32.totalorder %s112, 0
    %s114 = scalar_select %p113, %s112, 0
    %s115 = smul.u32 2, %s114
    %s116 = sadd.s32 0, 0
    %p117 = scmp.eq.s32.totalorder 0, 0
    // Predicated region
    $region34: #{tpu_custom_call.1} parent=1 // pred_check
      %p118 = pneg %p117
    $region35: #{tpu_custom_call.1} parent=1 // pred_check_branch
      %120 = sbr.rel (%p118) target = $region37
    $region36: #{tpu_custom_call.1} parent=1 // pred_region
      %vm121 = vcmask 0
      %122 = vst.msk [vmem:[#allocation2] sm:$0x1] %vm121, 0.0
      %123 = vst.msk [vmem:[#allocation3] sm:$0x1] %vm121, 0.0
    $region37: #{tpu_custom_call.1} parent=1 // pred_fallthru
      _
    %v124 = vld [vmem:[#allocation4] sm:$0xff]
    %v125 = vld [vmem:[#allocation7] sm:$0xff]
    %vm126 = vcmask 261120
    %v127 = vsel %vm126, %v124, -inf
    %128 = vmax.xlane.f32.xlu0 %v127
    %v129 = vpop.xlane.xlu0 %128
    %v130 = vsub.f32 %v124, %v129
    %v131 = vmul.f32 %v130, 1.442695
    %v132 = vpow.pop %v131
    %v133 = vsel %vm126, %v132, 0.0
    %134 = vadd.xlane.f32.xlu0 %v133
    %v135 = vpop.xlane.xlu0 %134
    %v136 = vlog2.pop %v135
    %v137 = vmul.f32 %v136, 0.6931472
    %v138 = vmul.f32 %v130, %v125
    %v139 = vsel %vm126, %v138, 0.0
    %140 = vadd.xlane.f32.xlu0 %v139
    %v141 = vpop.xlane.xlu0 %140
    %v142 = vsel %vm126, %v125, 0.0
    %143 = vadd.xlane.f32.xlu0 %v142
    %v144 = vpop.xlane.xlu0 %143
    %v145 = vmul.f32 %v137, %v144
    %v146 = vsub.f32 %v141, %v145
    %s147 = smul.u32 %s116, 8
    %v148 = vlaneseq
    %v149 = vshrl.u32 %v148, 7
    %v150 = vstv %s147
    %v151 = vadd.s32 %v150, %v149
    %vm152 = vcmp.lt.s32.totalorder %v151, 8
    %v153 = vsel %vm152, %v146, 0.0
    %v154 = vld [vmem:[#allocation2] sm:$0x1]
    %vm155 = vcmask 7168
    %v156 = vsel %vm155, %v153, 0.0
    %157 = vadd.xlane.f32.xlu0 %v156
    %v158 = vpop.xlane.xlu0 %157
    %v159 = vrot.slane %v158, 4
    %v160 = vadd.f32 %v158, %v159
    %v161 = vrot.slane %v160, 2
    %v162 = vadd.f32 %v160, %v161
    %v163 = vrot.slane %v162, 1
    %v164 = vadd.f32 %v162, %v163
    %s165 = vtos %v164
    %v166 = vstv %s165
    %v167 = vadd.f32 %v154, %v166
    %vm168 = vcmask 0
    %169 = vst.msk [vmem:[#allocation2] sm:$0x1] %vm168, %v167
    %v170 = vld [vmem:[#allocation9] sm:$0xff]
    %v171 = vld [vmem:[#allocation9 + $0x8] sm:$0xff]
    %v172 = vld [vmem:[#allocation10] sm:$0xff]
    %v173 = vld [vmem:[#allocation10 + $0x8] sm:$0xff]
    %v174 = vsel %vm126, %v170, -inf
    %175 = vmax.xlane.f32.xlu0 %v174
    %v176 = vpop.xlane.xlu0 %175
    %v177 = vsel %vm126, %v171, -inf
    %178 = vmax.xlane.f32.xlu0 %v177
    %v179 = vpop.xlane.xlu0 %178
    %v180 = vsub.f32 %v170, %v176
    %v181 = vsub.f32 %v171, %v179
    %v182 = vmul.f32 %v180, 1.442695
    %v183 = vpow.pop %v182
    %v184 = vmul.f32 %v181, 1.442695
    %v185 = vpow.pop %v184
    %v186 = vsel %vm126, %v183, 0.0
    %187 = vadd.xlane.f32.xlu0 %v186
    %v188 = vpop.xlane.xlu0 %187
    %v189 = vsel %vm126, %v185, 0.0
    %190 = vadd.xlane.f32.xlu0 %v189
    %v191 = vpop.xlane.xlu0 %190
    %v192 = vrcp.pop %v188
    %v193 = vmul.f32 %v188, %v192
    %v194 = vsub.f32 1.0, %v193
    %v195 = vmul.f32 %v192, %v194
    %v196 = vadd.f32 %v192, %v195
    %vm197 = vweird.f32 %v188
    %vm198 = vweird.f32 %v192
    %vm199 = vmor %vm197, %vm198
    %v200 = vsel %vm199, %v192, %v196
    %v201 = vand.u32 2147483647, %v188
    %vm202 = vcmp.eq.f32.partialorder %v201, 8.507059e+37
    %v203 = vand.u32 %v188, 2147483648
    %v204 = vor.u32 1.1754944e-38, %v203
    %v205 = vsel %vm202, %v204, %v200
    %v206 = vrcp.pop %v191
    %v207 = vmul.f32 %v191, %v206
    %v208 = vsub.f32 1.0, %v207
    %v209 = vmul.f32 %v206, %v208
    %v210 = vadd.f32 %v206, %v209
    %vm211 = vweird.f32 %v191
    %vm212 = vweird.f32 %v206
    %vm213 = vmor %vm211, %vm212
    %v214 = vsel %vm213, %v206, %v210
    %v215 = vand.u32 2147483647, %v191
    %vm216 = vcmp.eq.f32.partialorder %v215, 8.507059e+37
    %v217 = vand.u32 %v191, 2147483648
    %v218 = vor.u32 1.1754944e-38, %v217
    %v219 = vsel %vm216, %v218, %v214
    %v220 = vmul.f32 %v183, %v205
    %v221 = vmul.f32 %v185, %v219
    %v222 = vsub.f32 %v220, %v172
    %v223 = vsub.f32 %v221, %v173
    %v224 = vmul.f32 %v222, %v222
    %v225 = vmul.f32 %v223, %v223
    %v226 = vsel %vm126, %v224, 0.0
    %227 = vadd.xlane.f32.xlu0 %v226
    %v228 = vpop.xlane.xlu0 %227
    %v229 = vsel %vm126, %v225, 0.0
    %230 = vadd.xlane.f32.xlu0 %v229
    %v231 = vpop.xlane.xlu0 %230
    %s232 = smul.u32 %s116, 16
    %v233 = vadd.s32 %v149, 8
    %v234 = vstv %s232
    %v235 = vadd.s32 %v234, %v149
    %v236 = vadd.s32 %v234, %v233
    %vm237 = vcmp.lt.s32.totalorder %v235, 16
    %vm238 = vcmp.lt.s32.totalorder %v236, 16
    %v239 = vsel %vm237, %v228, 0.0
    %v240 = vsel %vm238, %v231, 0.0
    %v241 = vld [vmem:[#allocation3] sm:$0x1]
    %v242 = vsel %vm155, %v239, 0.0
    %v243 = vsel %vm155, %v240, 0.0
    %v244 = vadd.f32 %v242, %v243
    %245 = vadd.xlane.f32.xlu0 %v244
    %v246 = vpop.xlane.xlu0 %245
    %v247 = vrot.slane %v246, 4
    %v248 = vadd.f32 %v246, %v247
    %v249 = vrot.slane %v248, 2
    %v250 = vadd.f32 %v248, %v249
    %v251 = vrot.slane %v250, 1
    %v252 = vadd.f32 %v250, %v251
    %s253 = vtos %v252
    %v254 = vstv %s253
    %v255 = vadd.f32 %v241, %v254
    %256 = vst.msk [vmem:[#allocation3] sm:$0x1] %vm168, %v255
    // Predicated region
    $region38: #{tpu_custom_call.1} parent=1 // pred_check
      %p257 = pneg %p117
    $region39: #{tpu_custom_call.1} parent=1 // pred_check_branch
      %259 = sbr.rel (%p257) target = $region41
    $region40: #{tpu_custom_call.1} parent=1 // pred_region
      %v260 = vld [vmem:[#allocation2] sm:$0x1]
      %v262 = vperm.slane %v260, 0
      %263 = vset.pattern.permute.xlu0 0
      %264 = vperm.xlu0 %263, %v262
      %v265 = vpop.permute.xlu0 %264
      %267 = vst [vmem:[#allocation12] sm:$0xff] %v265
      %v268 = vld [vmem:[#allocation3] sm:$0x1]
      %v270 = vperm.slane %v268, 0
      %271 = vset.pattern.permute.xlu0 0
      %272 = vperm.xlu0 %271, %v270
      %v273 = vpop.permute.xlu0 %272
      %275 = vst [vmem:[#allocation13] sm:$0xff] %v273
    $region41: #{tpu_custom_call.1} parent=1 // pred_fallthru
      _
    // Predicated region
    $region42: #{tpu_custom_call.1} parent=1 // pred_check
      _
    $region43: #{tpu_custom_call.1} parent=1 // pred_check_branch
      %277 = sbr.rel (0) target = $region45
    $region44: #{tpu_custom_call.1} parent=1 // pred_region
      %279 = vsyncadd [#allocation6], 0
      %s281 = sshll.u32 [#allocation12], 4
      %s282 = int_to_ptr.vmem [resolvable:$true] %s281
      %s283 = sshll.u32 %s4, 4
      %s284 = int_to_ptr.hbm [resolvable:$true] %s283
      %286 = dma.vmem_to_hbm [thread:$0]  %s282, 128, %s284, [#allocation6]
    $region45: #{tpu_custom_call.1} parent=1 // pred_fallthru
      _
    // Predicated region
    $region46: #{tpu_custom_call.1} parent=1 // pred_check
      _
    $region47: #{tpu_custom_call.1} parent=1 // pred_check_branch
      %288 = sbr.rel (0) target = $region49
    $region48: #{tpu_custom_call.1} parent=1 // pred_region
      %290 = vsyncadd [#allocation14], 0
      %s292 = sshll.u32 [#allocation13], 4
      %s293 = int_to_ptr.vmem [resolvable:$true] %s292
      %s294 = sshll.u32 %s5, 4
      %s295 = int_to_ptr.hbm [resolvable:$true] %s294
      %297 = dma.vmem_to_hbm [thread:$0]  %s293, 128, %s295, [#allocation14]
    $region49: #{tpu_custom_call.1} parent=1 // pred_fallthru
      _
    // Predicated region
    $region50: #{tpu_custom_call.1} parent=1 // pred_check
      _
    $region51: #{tpu_custom_call.1} parent=1 // pred_check_branch
      %299 = sbr.rel (0) target = $region53
    $region52: #{tpu_custom_call.1} parent=1 // pred_region
      %301 = dma.done [#allocation6], 128
    $region53: #{tpu_custom_call.1} parent=1 // pred_fallthru
      _
    // Predicated region
    $region54: #{tpu_custom_call.1} parent=1 // pred_check
      _
    $region55: #{tpu_custom_call.1} parent=1 // pred_check_branch
      %303 = sbr.rel (0) target = $region57
    $region56: #{tpu_custom_call.1} parent=1 // pred_region
      %305 = dma.done [#allocation14], 128
    $region57: #{tpu_custom_call.1} parent=1 // pred_fallthru
      _
    %306 = vsyncpa [#allocation5], 1
    %307 = vsyncpa [#allocation8], 1
    %308 = vsyncpa [#allocation11], 1
    %309 = vsyncpa [#allocation6], 1
    %310 = vsyncpa [#allocation14], 1

</llo_original>
